<compile_context>
chip_gen: v7x
topology: tpu7x:2x2x1
jax: 0.10.0
libtpu: 0.0.40
codegen_flags: <defaults>
</compile_context>

<pallas_src>
import functools

import jax
import jax.numpy as jnp
from jax import lax
from jax.experimental import pallas as pl
from jax.experimental.pallas import tpu as pltpu


def _round_up(x, m):
    return (x + m - 1) // m * m


def _highway_fused_kernel(x_ref, w_ref, b_ref, o_ref, *, num_layers, hp):
    """All layers in one invocation; full weight stack resident in VMEM."""
    h0 = x_ref[...].astype(jnp.float32)                    # (TB, Hp)

    def body(layer, h):
        w = w_ref[layer]                                    # (Hp, 3*Hp)
        b = b_ref[layer]                                    # (1, 3*Hp) f32
        z = jnp.dot(h.astype(w.dtype), w,
                    preferred_element_type=jnp.float32) + b
        gate = jax.nn.sigmoid(z[:, 0:hp])
        non_linear = jnp.maximum(z[:, hp:2 * hp], 0.0)
        linear = z[:, 2 * hp:3 * hp]
        return linear + gate * (non_linear - linear)

    h = lax.fori_loop(0, num_layers, body, h0, unroll=True)
    o_ref[...] = h.astype(o_ref.dtype)


def _highway_streamed_kernel(x_ref, w_ref, b_ref, o_ref, h_ref, *, hp):
    """One layer per grid step (large H); running activation in VMEM scratch."""
    layer = pl.program_id(1)

    @pl.when(layer == 0)
    def _():
        h_ref[...] = x_ref[...].astype(jnp.float32)

    h = h_ref[...]
    w = w_ref[0]                                            # (Hp, 3*Hp)
    z = jnp.dot(h.astype(w.dtype), w,
                preferred_element_type=jnp.float32) + b_ref[0]
    gate = jax.nn.sigmoid(z[:, 0:hp])
    non_linear = jnp.maximum(z[:, hp:2 * hp], 0.0)
    linear = z[:, 2 * hp:3 * hp]
    h_new = linear + gate * (non_linear - linear)
    h_ref[...] = h_new

    @pl.when(layer == pl.num_programs(1) - 1)
    def _():
        o_ref[...] = h_new.astype(o_ref.dtype)


def prepare_highway_params(wn, bn, wl, bl, wg, bg, *, compute_dtype=jnp.bfloat16):
    """Pack PyTorch-layout parameters into fused, lane-padded tensors.

    Call ONCE outside the hot path (this is where the transpose/concat lives).

    Args:
      wn, wl, wg: (L, H, H) weights in nn.Linear layout (out, in).
      bn, bl, bg: (L, H) biases.
    Returns:
      w_fused: (L, Hp, 3*Hp) in compute_dtype; columns = [gate | non_linear | linear].
      b_fused: (L, 1, 3*Hp) float32.
    """
    L, H, _ = wn.shape
    Hp = _round_up(H, 128)
    w = jnp.zeros((L, Hp, 3 * Hp), dtype=jnp.float32)
    w = w.at[:, :H, 0:H].set(jnp.swapaxes(wg, 1, 2).astype(jnp.float32))
    w = w.at[:, :H, Hp:Hp + H].set(jnp.swapaxes(wn, 1, 2).astype(jnp.float32))
    w = w.at[:, :H, 2 * Hp:2 * Hp + H].set(jnp.swapaxes(wl, 1, 2).astype(jnp.float32))
    b = jnp.zeros((L, 1, 3 * Hp), dtype=jnp.float32)
    b = b.at[:, 0, 0:H].set(bg.astype(jnp.float32))
    b = b.at[:, 0, Hp:Hp + H].set(bn.astype(jnp.float32))
    b = b.at[:, 0, 2 * Hp:2 * Hp + H].set(bl.astype(jnp.float32))
    return w.astype(compute_dtype), b


def highway_pallas(x, w_fused, b_fused, *, force_layer_grid=False):
    """Highway stack forward. x: (B, H); params from prepare_highway_params."""
    B, H = x.shape
    L, Hp, threeHp = w_fused.shape
    assert threeHp == 3 * Hp and H <= Hp

    # Batch tiling: sublane-pad, tile so megacore can shard the batch axis.
    Bp = _round_up(max(B, 8), 8)
    tb = min(Bp, 256)
    Bp = _round_up(Bp, tb)
    nb = Bp // tb

    x_p = jnp.zeros((Bp, Hp), dtype=x.dtype)
    x_p = x_p.at[:B, :H].set(x)

    w_itemsize = jnp.dtype(w_fused.dtype).itemsize
    x_itemsize = jnp.dtype(x.dtype).itemsize
    weights_bytes = L * Hp * 3 * Hp * w_itemsize + L * 3 * Hp * 4
    io_bytes = 2 * 2 * tb * Hp * x_itemsize            # double-buffered in/out tiles
    work_bytes = tb * 3 * Hp * 4 + 4 * tb * Hp * 4     # z + elementwise temporaries

    use_layer_grid = force_layer_grid or weights_bytes > (16 << 20)

    if not use_layer_grid:
        kernel = functools.partial(_highway_fused_kernel, num_layers=L, hp=Hp)
        grid_spec = pltpu.PrefetchScalarGridSpec(
            num_scalar_prefetch=0,
            grid=(nb,),
            in_specs=[
                pl.BlockSpec((tb, Hp), lambda i: (i, 0)),
                pl.BlockSpec((L, Hp, 3 * Hp), lambda i: (0, 0, 0)),
                pl.BlockSpec((L, 1, 3 * Hp), lambda i: (0, 0, 0)),
            ],
            out_specs=pl.BlockSpec((tb, Hp), lambda i: (i, 0)),
        )
        dims = ("parallel",)
        footprint = weights_bytes + io_bytes + work_bytes
    else:
        kernel = functools.partial(_highway_streamed_kernel, hp=Hp)
        grid_spec = pltpu.PrefetchScalarGridSpec(
            num_scalar_prefetch=0,
            grid=(nb, L),
            in_specs=[
                pl.BlockSpec((tb, Hp), lambda i, l: (i, 0)),
                pl.BlockSpec((1, Hp, 3 * Hp), lambda i, l: (l, 0, 0)),
                pl.BlockSpec((1, 1, 3 * Hp), lambda i, l: (l, 0, 0)),
            ],
            out_specs=pl.BlockSpec((tb, Hp), lambda i, l: (i, 0)),
            scratch_shapes=[pltpu.VMEM((tb, Hp), jnp.float32)],
        )
        dims = ("parallel", "arbitrary")
        per_layer_w = Hp * 3 * Hp * w_itemsize + 3 * Hp * 4
        footprint = 2 * per_layer_w + io_bytes + work_bytes + tb * Hp * 4

    # Explicit VMEM limit: real footprint + headroom, capped inside v7x's 64 MiB.
    vmem_limit = int(min(max(2 * footprint + (4 << 20), 16 << 20), 48 << 20))

    out = pl.pallas_call(
        kernel,
        out_shape=jax.ShapeDtypeStruct((Bp, Hp), x.dtype),
        grid_spec=grid_spec,
        compiler_params=pltpu.CompilerParams(
            dimension_semantics=dims,
            vmem_limit_bytes=vmem_limit,
        ),
    )(x_p, w_fused, b_fused)
    return out[:B, :H]


def highway_reference(x, wn, bn, wl, bl, wg, bg):
    """Pure-JAX reference matching the PyTorch forward."""
    L = wn.shape[0]
    for layer in range(L):
        gate = jax.nn.sigmoid(x @ wg[layer].T + bg[layer])
        non_linear = jax.nn.relu(x @ wn[layer].T + bn[layer])
        linear = x @ wl[layer].T + bl[layer]
        x = gate * non_linear + (1.0 - gate) * linear
    return x


if __name__ == "__main__":
    num_highway_layers = 3
    input_size = 32
    batch = 8

    key = jax.random.PRNGKey(0)
    keys = jax.random.split(key, 7)

    x = jax.random.normal(keys[0], (batch, input_size), dtype=jnp.float32)
    # Synthetic parameters in nn.Linear shapes: W (out, in), b (out,).
    scale = 1.0 / jnp.sqrt(jnp.float32(input_size))
    wn = jax.random.normal(keys[1], (num_highway_layers, input_size, input_size),
                           dtype=jnp.float32) * scale
    bn = jax.random.normal(keys[2], (num_highway_layers, input_size),
                           dtype=jnp.float32) * scale
    wl = jax.random.normal(keys[3], (num_highway_layers, input_size, input_size),
                           dtype=jnp.float32) * scale
    bl = jax.random.normal(keys[4], (num_highway_layers, input_size),
                           dtype=jnp.float32) * scale
    wg = jax.random.normal(keys[5], (num_highway_layers, input_size, input_size),
                           dtype=jnp.float32) * scale
    bg = jax.random.normal(keys[6], (num_highway_layers, input_size),
                           dtype=jnp.float32) * scale

    ref = highway_reference(x, wn, bn, wl, bl, wg, bg)

    # 1) f32 weights, fused in-kernel layer loop (exact match vs reference).
    w32, b32 = prepare_highway_params(wn, bn, wl, bl, wg, bg,
                                      compute_dtype=jnp.float32)
    out_f32 = jax.block_until_ready(highway_pallas(x, w32, b32))
    assert out_f32.shape == ref.shape and out_f32.dtype == ref.dtype
    assert jnp.allclose(out_f32, ref, atol=1e-5, rtol=1e-5), "f32 fused path mismatch"

    # 2) bf16 weights (full-rate MXU), f32 accumulation -- loose tolerance.
    wbf, bbf = prepare_highway_params(wn, bn, wl, bl, wg, bg,
                                      compute_dtype=jnp.bfloat16)
    out_bf16 = jax.block_until_ready(highway_pallas(x, wbf, bbf))
    assert jnp.allclose(out_bf16, ref, atol=1e-1, rtol=1e-1), "bf16 fused path mismatch"

    # 3) Layer-streaming fallback (used automatically for large H) also runs.
    out_stream = jax.block_until_ready(
        highway_pallas(x, w32, b32, force_layer_grid=True))
    assert jnp.allclose(out_stream, ref, atol=1e-5, rtol=1e-5), "streamed path mismatch"

    print("KERNEL_OK")
</pallas_src>

<mosaic_0001>
module attributes {stable_mosaic.version = 11 : i64} {
  func.func @_highway_fused_kernel(%arg0: i32, %arg1: memref<8x128xf32, #tpu.memory_space<vmem>>, %arg2: memref<3x128x384xf32, #tpu.memory_space<vmem>>, %arg3: memref<3x1x384xf32, #tpu.memory_space<vmem>>, %arg4: memref<8x128xf32, #tpu.memory_space<vmem>>) attributes {dimension_semantics = [#tpu.dimension_semantics<parallel>], iteration_bounds = array<i64: 1>, scalar_prefetch = 0 : i64, scratch_operands = 0 : i64, tpu.core_type = #tpu.core_type<tc>, window_params = [{transform_indices = @transform_0, window_bounds = array<i64: 8, 128>}, {pipeline_mode = #tpu.pipeline_mode<synchronous>, transform_indices = @transform_1, window_bounds = array<i64: 3, 128, 384>}, {pipeline_mode = #tpu.pipeline_mode<synchronous>, transform_indices = @transform_2, window_bounds = array<i64: 3, 1, 384>}, {transform_indices = @transform_3, window_bounds = array<i64: 8, 128>}]} {
    %c0 = arith.constant 0 : index
    %c0_0 = arith.constant 0 : index
    %0 = vector.load %arg1[%c0, %c0_0] : memref<8x128xf32, #tpu.memory_space<vmem>>, vector<8x128xf32>
    %c0_i32 = arith.constant 0 : i32
    %1 = arith.index_cast %c0_i32 : i32 to index
    %c0_1 = arith.constant 0 : index
    %c0_2 = arith.constant 0 : index
    %2 = vector.load %arg2[%1, %c0_1, %c0_2] : memref<3x128x384xf32, #tpu.memory_space<vmem>>, vector<1x128x384xf32>
    %3 = vector.shape_cast %2 : vector<1x128x384xf32> to vector<128x384xf32>
    %4 = arith.index_cast %c0_i32 : i32 to index
    %c0_3 = arith.constant 0 : index
    %c0_4 = arith.constant 0 : index
    %5 = vector.load %arg3[%4, %c0_3, %c0_4] : memref<3x1x384xf32, #tpu.memory_space<vmem>>, vector<1x1x384xf32>
    %6 = vector.shape_cast %5 : vector<1x1x384xf32> to vector<1x384xf32>
    %cst = arith.constant dense<0.000000e+00> : vector<8x384xf32>
    %7 = tpu.matmul %0, %3, %cst {dimension_numbers = #tpu.dot_dimension_numbers<[1], [0], [0], [1], [0, 0, 1, 1], [], []>} : vector<8x128xf32>, vector<128x384xf32>, vector<8x384xf32> -> vector<8x384xf32>
    %8 = vector.broadcast %6 : vector<1x384xf32> to vector<8x384xf32>
    %9 = arith.addf %7, %8 : vector<8x384xf32>
    %10 = vector.extract_strided_slice %9 {offsets = [0, 0], sizes = [8, 128], strides = [1, 1]} : vector<8x384xf32> to vector<8x128xf32>
    %11 = arith.negf %10 : vector<8x128xf32>
    %12 = math.exp %11 : vector<8x128xf32>
    %cst_5 = arith.constant 1.000000e+00 : f32
    %13 = vector.broadcast %cst_5 : f32 to vector<8x128xf32>
    %14 = arith.addf %13, %12 : vector<8x128xf32>
    %15 = arith.divf %13, %14 : vector<8x128xf32>
    %16 = vector.extract_strided_slice %9 {offsets = [0, 128], sizes = [8, 128], strides = [1, 1]} : vector<8x384xf32> to vector<8x128xf32>
    %cst_6 = arith.constant 0.000000e+00 : f32
    %17 = vector.broadcast %cst_6 : f32 to vector<8x128xf32>
    %18 = arith.maximumf %16, %17 : vector<8x128xf32>
    %19 = vector.extract_strided_slice %9 {offsets = [0, 256], sizes = [8, 128], strides = [1, 1]} : vector<8x384xf32> to vector<8x128xf32>
    %20 = arith.subf %18, %19 : vector<8x128xf32>
    %21 = arith.mulf %15, %20 : vector<8x128xf32>
    %22 = arith.addf %19, %21 : vector<8x128xf32>
    %c1_i32 = arith.constant 1 : i32
    %23 = arith.index_cast %c1_i32 : i32 to index
    %c0_7 = arith.constant 0 : index
    %c0_8 = arith.constant 0 : index
    %24 = vector.load %arg2[%23, %c0_7, %c0_8] : memref<3x128x384xf32, #tpu.memory_space<vmem>>, vector<1x128x384xf32>
    %25 = vector.shape_cast %24 : vector<1x128x384xf32> to vector<128x384xf32>
    %26 = arith.index_cast %c1_i32 : i32 to index
    %c0_9 = arith.constant 0 : index
    %c0_10 = arith.constant 0 : index
    %27 = vector.load %arg3[%26, %c0_9, %c0_10] : memref<3x1x384xf32, #tpu.memory_space<vmem>>, vector<1x1x384xf32>
    %28 = vector.shape_cast %27 : vector<1x1x384xf32> to vector<1x384xf32>
    %cst_11 = arith.constant dense<0.000000e+00> : vector<8x384xf32>
    %29 = tpu.matmul %22, %25, %cst_11 {dimension_numbers = #tpu.dot_dimension_numbers<[1], [0], [0], [1], [0, 0, 1, 1], [], []>} : vector<8x128xf32>, vector<128x384xf32>, vector<8x384xf32> -> vector<8x384xf32>
    %30 = vector.broadcast %28 : vector<1x384xf32> to vector<8x384xf32>
    %31 = arith.addf %29, %30 : vector<8x384xf32>
    %32 = vector.extract_strided_slice %31 {offsets = [0, 0], sizes = [8, 128], strides = [1, 1]} : vector<8x384xf32> to vector<8x128xf32>
    %33 = arith.negf %32 : vector<8x128xf32>
    %34 = math.exp %33 : vector<8x128xf32>
    %cst_12 = arith.constant 1.000000e+00 : f32
    %35 = vector.broadcast %cst_12 : f32 to vector<8x128xf32>
    %36 = arith.addf %35, %34 : vector<8x128xf32>
    %37 = arith.divf %35, %36 : vector<8x128xf32>
    %38 = vector.extract_strided_slice %31 {offsets = [0, 128], sizes = [8, 128], strides = [1, 1]} : vector<8x384xf32> to vector<8x128xf32>
    %cst_13 = arith.constant 0.000000e+00 : f32
    %39 = vector.broadcast %cst_13 : f32 to vector<8x128xf32>
    %40 = arith.maximumf %38, %39 : vector<8x128xf32>
    %41 = vector.extract_strided_slice %31 {offsets = [0, 256], sizes = [8, 128], strides = [1, 1]} : vector<8x384xf32> to vector<8x128xf32>
    %42 = arith.subf %40, %41 : vector<8x128xf32>
    %43 = arith.mulf %37, %42 : vector<8x128xf32>
    %44 = arith.addf %41, %43 : vector<8x128xf32>
    %c2_i32 = arith.constant 2 : i32
    %45 = arith.index_cast %c2_i32 : i32 to index
    %c0_14 = arith.constant 0 : index
    %c0_15 = arith.constant 0 : index
    %46 = vector.load %arg2[%45, %c0_14, %c0_15] : memref<3x128x384xf32, #tpu.memory_space<vmem>>, vector<1x128x384xf32>
    %47 = vector.shape_cast %46 : vector<1x128x384xf32> to vector<128x384xf32>
    %48 = arith.index_cast %c2_i32 : i32 to index
    %c0_16 = arith.constant 0 : index
    %c0_17 = arith.constant 0 : index
    %49 = vector.load %arg3[%48, %c0_16, %c0_17] : memref<3x1x384xf32, #tpu.memory_space<vmem>>, vector<1x1x384xf32>
    %50 = vector.shape_cast %49 : vector<1x1x384xf32> to vector<1x384xf32>
    %cst_18 = arith.constant dense<0.000000e+00> : vector<8x384xf32>
    %51 = tpu.matmul %44, %47, %cst_18 {dimension_numbers = #tpu.dot_dimension_numbers<[1], [0], [0], [1], [0, 0, 1, 1], [], []>} : vector<8x128xf32>, vector<128x384xf32>, vector<8x384xf32> -> vector<8x384xf32>
    %52 = vector.broadcast %50 : vector<1x384xf32> to vector<8x384xf32>
    %53 = arith.addf %51, %52 : vector<8x384xf32>
    %54 = vector.extract_strided_slice %53 {offsets = [0, 0], sizes = [8, 128], strides = [1, 1]} : vector<8x384xf32> to vector<8x128xf32>
    %55 = arith.negf %54 : vector<8x128xf32>
    %56 = math.exp %55 : vector<8x128xf32>
    %cst_19 = arith.constant 1.000000e+00 : f32
    %57 = vector.broadcast %cst_19 : f32 to vector<8x128xf32>
    %58 = arith.addf %57, %56 : vector<8x128xf32>
    %59 = arith.divf %57, %58 : vector<8x128xf32>
    %60 = vector.extract_strided_slice %53 {offsets = [0, 128], sizes = [8, 128], strides = [1, 1]} : vector<8x384xf32> to vector<8x128xf32>
    %cst_20 = arith.constant 0.000000e+00 : f32
    %61 = vector.broadcast %cst_20 : f32 to vector<8x128xf32>
    %62 = arith.maximumf %60, %61 : vector<8x128xf32>
    %63 = vector.extract_strided_slice %53 {offsets = [0, 256], sizes = [8, 128], strides = [1, 1]} : vector<8x384xf32> to vector<8x128xf32>
    %64 = arith.subf %62, %63 : vector<8x128xf32>
    %65 = arith.mulf %59, %64 : vector<8x128xf32>
    %66 = arith.addf %63, %65 : vector<8x128xf32>
    %c3_i32 = arith.constant 3 : i32
    %c0_21 = arith.constant 0 : index
    %c0_22 = arith.constant 0 : index
    %67 = vector.load %arg4[%c0_21, %c0_22] : memref<8x128xf32, #tpu.memory_space<vmem>>, vector<8x128xf32>
    tpu.vector_store %arg4[%c0_21, %c0_22], %66 {strides = array<i32>} : memref<8x128xf32, #tpu.memory_space<vmem>>, vector<8x128xf32>,
    return
  }
  func.func @transform_0(%arg0: i32) -> (i32, i32) {
    %c0_i32 = arith.constant 0 : i32
    %c0_i32_0 = arith.constant 0 : i32
    return %arg0, %c0_i32 : i32, i32
  }
  func.func @transform_1(%arg0: i32) -> (i32, i32, i32) {
    %c0_i32 = arith.constant 0 : i32
    %c0_i32_0 = arith.constant 0 : i32
    %c0_i32_1 = arith.constant 0 : i32
    %c0_i32_2 = arith.constant 0 : i32
    return %c0_i32, %c0_i32_0, %c0_i32_1 : i32, i32, i32
  }
  func.func @transform_2(%arg0: i32) -> (i32, i32, i32) {
    %c0_i32 = arith.constant 0 : i32
    %c0_i32_0 = arith.constant 0 : i32
    %c0_i32_1 = arith.constant 0 : i32
    %c0_i32_2 = arith.constant 0 : i32
    return %c0_i32, %c0_i32_0, %c0_i32_1 : i32, i32, i32
  }
  func.func @transform_3(%arg0: i32) -> (i32, i32) {
    %c0_i32 = arith.constant 0 : i32
    %c0_i32_0 = arith.constant 0 : i32
    return %arg0, %c0_i32 : i32, i32
  }
}

</mosaic_0001>

<llo_original>
// kernel: tpu_custom_call.1
$region0: #{tpu_custom_call.1}
  #allocation0 [shape = 'u32[]', space=smem, size = 0x4, offset = 0x4, fixed_abs, tag = 'smem constant byte address 0x4 - core index']
  #allocation1 [shape = 'u32[144,128]{1,0:T(1,128)}', space=vmem, size = 0x12000, scoped, tag = 'internal scratch']
  %s0 = inlined_call_operand.hbm [shape: f32[8,128], index: 0, kind: input, shape index: {}]
  %s1 = inlined_call_operand.hbm [shape: f32[3,128,384], index: 1, kind: input, shape index: {}]
  %s2 = inlined_call_operand.hbm [shape: f32[3,1,384], index: 2, kind: input, shape index: {}]
  %s3 = inlined_call_operand.hbm [shape: f32[8,128], index: 3, kind: output, shape index: {}]
  %s4 = sld [smem:[#allocation0]]
  $region34: #{tpu_custom_call.1} parent=0
    _
  %s6 = ssub.s32 1, %s4
  %s7 = scalar_select 0, %s6, %s4
  $region1: #{tpu_custom_call.1} parent=0
    #allocation2 [shape = 'u8[4096]{0}', space=vmem, size = 0x1000, scoped, tag = 'input window, operand 0, single buffered']
    #allocation3 [shape = 's32[1]{0}', space=sflag, size = 0x4, scoped, tag = 'scoped memory for tpu_custom_call.1']
    #allocation4 [shape = 's32[1]{0}', space=sflag, size = 0x4, scoped, tag = 'scoped memory for tpu_custom_call.1']
    #allocation5 [shape = 'u8[589824]{0}', space=vmem, size = 0x90000, scoped, tag = 'input window, operand 1, single buffered']
    #allocation6 [shape = 's32[1]{0}', space=sflag, size = 0x4, scoped, tag = 'scoped memory for tpu_custom_call.1']
    #allocation7 [shape = 'u8[4608]{0}', space=vmem, size = 0x1400, scoped, tag = 'input window, operand 2, single buffered']
    #allocation8 [shape = 'u8[4096]{0}', space=vmem, size = 0x1000, scoped, tag = 'output window, operand 0, single buffered']
    %8 = vsyncpa [#allocation3], 0
    %9 = vsyncpa [#allocation6], 0
    %10 = vsyncpa [#allocation4], 0
    // Predicated region
    $region2: #{tpu_custom_call.1} parent=1 // pred_check
      _
    $region3: #{tpu_custom_call.1} parent=1 // pred_check_branch
      %12 = sbr.rel (0) target = $region5
    $region4: #{tpu_custom_call.1} parent=1 // pred_region
      %s14 = ssub.s32 128, 128
      %15 = vsyncadd [#allocation3], %s14
      %s17 = sshll.u32 [#allocation2], 4
      %s18 = int_to_ptr.vmem [resolvable:$true] %s17
      %20 = dma.hbm_to_vmem [thread:$0]  %s0, 128, %s18, [#allocation3]
    $region5: #{tpu_custom_call.1} parent=1 // pred_fallthru
      _
    // Predicated region
    $region6: #{tpu_custom_call.1} parent=1 // pred_check
      _
    $region7: #{tpu_custom_call.1} parent=1 // pred_check_branch
      %22 = sbr.rel (0) target = $region9
    $region8: #{tpu_custom_call.1} parent=1 // pred_region
      %s24 = ssub.s32 18432, 18432
      %25 = vsyncadd [#allocation6], %s24
      %s26 = sshll.u32 [#allocation5], 4
      %s27 = int_to_ptr.vmem [resolvable:$true] %s26
      %32 = dma.hbm_to_vmem [thread:$0]  %s1, 18432, %s27, [#allocation6], 384, 384, 24
    $region9: #{tpu_custom_call.1} parent=1 // pred_fallthru
      _
    // Predicated region
    $region10: #{tpu_custom_call.1} parent=1 // pred_check
      _
    $region11: #{tpu_custom_call.1} parent=1 // pred_check_branch
      %34 = sbr.rel (0) target = $region13
    $region12: #{tpu_custom_call.1} parent=1 // pred_region
      %s36 = ssub.s32 144, 144
      %37 = vsyncadd [#allocation6], %s36
      %s38 = sshll.u32 [#allocation7], 4
      %s39 = int_to_ptr.vmem [resolvable:$true] %s38
      %44 = dma.hbm_to_vmem [thread:$0]  %s2, 144, %s39, [#allocation6], 48, 48, 3
    $region13: #{tpu_custom_call.1} parent=1 // pred_fallthru
      _
    // Predicated region
    $region14: #{tpu_custom_call.1} parent=1 // pred_check
      _
    $region15: #{tpu_custom_call.1} parent=1 // pred_check_branch
      %46 = sbr.rel (0) target = $region17
    $region16: #{tpu_custom_call.1} parent=1 // pred_region
      %47 = dma.done [#allocation3], 128
    $region17: #{tpu_custom_call.1} parent=1 // pred_fallthru
      _
    // Predicated region
    $region18: #{tpu_custom_call.1} parent=1 // pred_check
      _
    $region19: #{tpu_custom_call.1} parent=1 // pred_check_branch
      %49 = sbr.rel (0) target = $region21
    $region20: #{tpu_custom_call.1} parent=1 // pred_region
      %50 = dma.done [#allocation6], 18432
    $region21: #{tpu_custom_call.1} parent=1 // pred_fallthru
      _
    // Predicated region
    $region22: #{tpu_custom_call.1} parent=1 // pred_check
      _
    $region23: #{tpu_custom_call.1} parent=1 // pred_check_branch
      %52 = sbr.rel (0) target = $region25
    $region24: #{tpu_custom_call.1} parent=1 // pred_region
      %53 = dma.done [#allocation6], 144
    $region25: #{tpu_custom_call.1} parent=1 // pred_fallthru
      _
    %v54 = vld [vmem:[#allocation2] sm:$0xff]
    %v55 = vld [vmem:[#allocation5] sm:$0xff]
    %v56 = vld [vmem:[#allocation5 + $0x8] sm:$0xff]
    %v57 = vld [vmem:[#allocation5 + $0x10] sm:$0xff]
    %v58 = vld [vmem:[#allocation5 + $0x18] sm:$0xff]
    %v59 = vld [vmem:[#allocation5 + $0x20] sm:$0xff]
    %v60 = vld [vmem:[#allocation5 + $0x28] sm:$0xff]
    %v61 = vld [vmem:[#allocation5 + $0x30] sm:$0xff]
    %v62 = vld [vmem:[#allocation5 + $0x38] sm:$0xff]
    %v63 = vld [vmem:[#allocation5 + $0x40] sm:$0xff]
    %v64 = vld [vmem:[#allocation5 + $0x48] sm:$0xff]
    %v65 = vld [vmem:[#allocation5 + $0x50] sm:$0xff]
    %v66 = vld [vmem:[#allocation5 + $0x58] sm:$0xff]
    %v67 = vld [vmem:[#allocation5 + $0x60] sm:$0xff]
    %v68 = vld [vmem:[#allocation5 + $0x68] sm:$0xff]
    %v69 = vld [vmem:[#allocation5 + $0x70] sm:$0xff]
    %v70 = vld [vmem:[#allocation5 + $0x78] sm:$0xff]
    %v71 = vld [vmem:[#allocation5 + $0x80] sm:$0xff]
    %v72 = vld [vmem:[#allocation5 + $0x88] sm:$0xff]
    %v73 = vld [vmem:[#allocation5 + $0x90] sm:$0xff]
    %v74 = vld [vmem:[#allocation5 + $0x98] sm:$0xff]
    %v75 = vld [vmem:[#allocation5 + $0xa0] sm:$0xff]
    %v76 = vld [vmem:[#allocation5 + $0xa8] sm:$0xff]
    %v77 = vld [vmem:[#allocation5 + $0xb0] sm:$0xff]
    %v78 = vld [vmem:[#allocation5 + $0xb8] sm:$0xff]
    %v79 = vld [vmem:[#allocation5 + $0xc0] sm:$0xff]
    %v80 = vld [vmem:[#allocation5 + $0xc8] sm:$0xff]
    %v81 = vld [vmem:[#allocation5 + $0xd0] sm:$0xff]
    %v82 = vld [vmem:[#allocation5 + $0xd8] sm:$0xff]
    %v83 = vld [vmem:[#allocation5 + $0xe0] sm:$0xff]
    %v84 = vld [vmem:[#allocation5 + $0xe8] sm:$0xff]
    %v85 = vld [vmem:[#allocation5 + $0xf0] sm:$0xff]
    %v86 = vld [vmem:[#allocation5 + $0xf8] sm:$0xff]
    %v87 = vld [vmem:[#allocation5 + $0x100] sm:$0xff]
    %v88 = vld [vmem:[#allocation5 + $0x108] sm:$0xff]
    %v89 = vld [vmem:[#allocation5 + $0x110] sm:$0xff]
    %v90 = vld [vmem:[#allocation5 + $0x118] sm:$0xff]
    %v91 = vld [vmem:[#allocation5 + $0x120] sm:$0xff]
    %v92 = vld [vmem:[#allocation5 + $0x128] sm:$0xff]
    %v93 = vld [vmem:[#allocation5 + $0x130] sm:$0xff]
    %v94 = vld [vmem:[#allocation5 + $0x138] sm:$0xff]
    %v95 = vld [vmem:[#allocation5 + $0x140] sm:$0xff]
    %v96 = vld [vmem:[#allocation5 + $0x148] sm:$0xff]
    %v97 = vld [vmem:[#allocation5 + $0x150] sm:$0xff]
    %v98 = vld [vmem:[#allocation5 + $0x158] sm:$0xff]
    %v99 = vld [vmem:[#allocation5 + $0x160] sm:$0xff]
    %v100 = vld [vmem:[#allocation5 + $0x168] sm:$0xff]
    %v101 = vld [vmem:[#allocation5 + $0x170] sm:$0xff]
    %v102 = vld [vmem:[#allocation5 + $0x178] sm:$0xff]
    %v103 = vld [vmem:[#allocation7] sm:$0x7]
    %v105 = vlaneseq
    %v106 = vshrl.u32 %v105, 7
    %v107 = vsub.s32 0, %v106
    %v108 = vrot.slane %v103, %v107
    %v109 = vlaneseq
    %v110 = vshrl.u32 %v109, 7
    %v111 = vsub.s32 1, %v110
    %v112 = vrot.slane %v103, %v111
    %v113 = vlaneseq
    %v114 = vshrl.u32 %v113, 7
    %v115 = vsub.s32 2, %v114
    %v116 = vrot.slane %v103, %v115
    %120 = vmatprep.subr.mxu0 %v56
    %121 = vmatpush1.msra.mxu0 %v55
    %122 = vmatprep.subr.mxu0 %v59
    %123 = vmatpush1.msra.mxu0 %v58
    %124 = vmatprep.subr.mxu0 %v62
    %125 = vmatpush1.msra.mxu0 %v61
    %126 = vmatprep.subr.mxu0 %v65
    %127 = vmatpush1.msra.mxu0 %v64
    %128 = vmatprep.subr.mxu0 %v68
    %129 = vmatpush1.msra.mxu0 %v67
    %130 = vmatprep.subr.mxu0 %v71
    %131 = vmatpush1.msra.mxu0 %v70
    %132 = vmatprep.subr.mxu0 %v74
    %133 = vmatpush1.msra.mxu0 %v73
    %134 = vmatprep.subr.mxu0 %v77
    %135 = vmatpush1.msra.mxu0 %v76
    %136 = vmatprep.subr.mxu0 %v80
    %137 = vmatpush1.msra.mxu0 %v79
    %138 = vmatprep.subr.mxu0 %v83
    %139 = vmatpush1.msra.mxu0 %v82
    %140 = vmatprep.subr.mxu0 %v86
    %141 = vmatpush1.msra.mxu0 %v85
    %142 = vmatprep.subr.mxu0 %v89
    %143 = vmatpush1.msra.mxu0 %v88
    %144 = vmatprep.subr.mxu0 %v92
    %145 = vmatpush1.msra.mxu0 %v91
    %146 = vmatprep.subr.mxu0 %v95
    %147 = vmatpush1.msra.mxu0 %v94
    %148 = vmatprep.subr.mxu0 %v98
    %149 = vmatpush1.msra.mxu0 %v97
    %150 = vmatprep.subr.mxu0 %v101
    %151 = vmatpush1.msra.mxu0 %v100
    %152 = vmatprep.subr.mxu0 0.0
    %153 = vmatpush1.msra.mxu0 0.0
    %154 = vmatprep.subr.mxu0 0.0
    %155 = vmatpush1.msra.mxu0 0.0
    %156 = vmatprep.subr.mxu0 0.0
    %157 = vmatpush1.msra.mxu0 0.0
    %158 = vmatprep.subr.mxu0 0.0
    %159 = vmatpush1.msra.mxu0 0.0
    %160 = vmatprep.subr.mxu0 0.0
    %161 = vmatpush1.msra.mxu0 0.0
    %162 = vmatprep.subr.mxu0 0.0
    %163 = vmatpush1.msra.mxu0 0.0
    %164 = vmatprep.subr.mxu0 0.0
    %165 = vmatpush1.msra.mxu0 0.0
    %166 = vmatprep.subr.mxu0 0.0
    %167 = vmatpush1.msra.mxu0 0.0
    %168 = vmatprep.subr.mxu0 0.0
    %169 = vmatpush1.msra.mxu0 0.0
    %170 = vmatprep.subr.mxu0 0.0
    %171 = vmatpush1.msra.mxu0 0.0
    %172 = vmatprep.subr.mxu0 0.0
    %173 = vmatpush1.msra.mxu0 0.0
    %174 = vmatprep.subr.mxu0 0.0
    %175 = vmatpush1.msra.mxu0 0.0
    %176 = vmatprep.subr.mxu0 0.0
    %177 = vmatpush1.msra.mxu0 0.0
    %178 = vmatprep.subr.mxu0 0.0
    %179 = vmatpush1.msra.mxu0 0.0
    %180 = vmatprep.subr.mxu0 0.0
    %181 = vmatpush1.msra.mxu0 0.0
    %182 = vmatprep.subr.mxu0 0.0
    %183 = vmatpush1.msra.mxu0 0.0
    %184 = vmatprep.mubr.f32.mxu0 0.0
    %185 = vmatmul.mubr.f32.gmra.mrb[0].mxu0 %v54
    %v186 = vpop.f32.mrb[0].mxu0
    %v187 = vadd.f32 %v108, %v186
    %v188 = vpop.f32.mrb[0].mxu0
    %v189 = vadd.f32 %v112, %v188
    %190 = vdwg.mxu0
    %191 = vmatprep.subr.mxu0 0.0
    %192 = vmatpush1.msra.mxu0 %v57
    %193 = vmatprep.subr.mxu0 0.0
    %194 = vmatpush1.msra.mxu0 %v60
    %195 = vmatprep.subr.mxu0 0.0
    %196 = vmatpush1.msra.mxu0 %v63
    %197 = vmatprep.subr.mxu0 0.0
    %198 = vmatpush1.msra.mxu0 %v66
    %199 = vmatprep.subr.mxu0 0.0
    %200 = vmatpush1.msra.mxu0 %v69
    %201 = vmatprep.subr.mxu0 0.0
    %202 = vmatpush1.msra.mxu0 %v72
    %203 = vmatprep.subr.mxu0 0.0
    %204 = vmatpush1.msra.mxu0 %v75
    %205 = vmatprep.subr.mxu0 0.0
    %206 = vmatpush1.msra.mxu0 %v78
    %207 = vmatprep.subr.mxu0 0.0
    %208 = vmatpush1.msra.mxu0 %v81
    %209 = vmatprep.subr.mxu0 0.0
    %210 = vmatpush1.msra.mxu0 %v84
    %211 = vmatprep.subr.mxu0 0.0
    %212 = vmatpush1.msra.mxu0 %v87
    %213 = vmatprep.subr.mxu0 0.0
    %214 = vmatpush1.msra.mxu0 %v90
    %215 = vmatprep.subr.mxu0 0.0
    %216 = vmatpush1.msra.mxu0 %v93
    %217 = vmatprep.subr.mxu0 0.0
    %218 = vmatpush1.msra.mxu0 %v96
    %219 = vmatprep.subr.mxu0 0.0
    %220 = vmatpush1.msra.mxu0 %v99
    %221 = vmatprep.subr.mxu0 0.0
    %222 = vmatpush1.msra.mxu0 %v102
    %223 = vmatprep.subr.mxu0 0.0
    %224 = vmatpush1.msra.mxu0 0.0
    %225 = vmatprep.subr.mxu0 0.0
    %226 = vmatpush1.msra.mxu0 0.0
    %227 = vmatprep.subr.mxu0 0.0
    %228 = vmatpush1.msra.mxu0 0.0
    %229 = vmatprep.subr.mxu0 0.0
    %230 = vmatpush1.msra.mxu0 0.0
    %231 = vmatprep.subr.mxu0 0.0
    %232 = vmatpush1.msra.mxu0 0.0
    %233 = vmatprep.subr.mxu0 0.0
    %234 = vmatpush1.msra.mxu0 0.0
    %235 = vmatprep.subr.mxu0 0.0
    %236 = vmatpush1.msra.mxu0 0.0
    %237 = vmatprep.subr.mxu0 0.0
    %238 = vmatpush1.msra.mxu0 0.0
    %239 = vmatprep.subr.mxu0 0.0
    %240 = vmatpush1.msra.mxu0 0.0
    %241 = vmatprep.subr.mxu0 0.0
    %242 = vmatpush1.msra.mxu0 0.0
    %243 = vmatprep.subr.mxu0 0.0
    %244 = vmatpush1.msra.mxu0 0.0
    %245 = vmatprep.subr.mxu0 0.0
    %246 = vmatpush1.msra.mxu0 0.0
    %247 = vmatprep.subr.mxu0 0.0
    %248 = vmatpush1.msra.mxu0 0.0
    %249 = vmatprep.subr.mxu0 0.0
    %250 = vmatpush1.msra.mxu0 0.0
    %251 = vmatprep.subr.mxu0 0.0
    %252 = vmatpush1.msra.mxu0 0.0
    %253 = vmatprep.subr.mxu0 0.0
    %254 = vmatpush1.msra.mxu0 0.0
    %255 = vmatprep.mubr.f32.mxu0 0.0
    %256 = vmatmul.mubr.f32.gmra.mrb[0].mxu0 %v54
    %v257 = vpop.f32.mrb[0].mxu0
    %v258 = vadd.f32 %v116, %v257
    %v259 = vpop.f32.mrb[0].mxu0
    %260 = vdwg.mxu0
    %v261 = vxor.u32 %v187, 2147483648
    %v262 = vmul.f32 %v261, 1.442695
    %v263 = vpow.pop %v262
    %v264 = vadd.f32 %v263, 1.0
    %v265 = vrcp.pop %v264
    %v266 = vmul.f32 1.0, %v265
    %v267 = vmax.f32 %v189, 0.0
    %v268 = vsub.f32 %v267, %v258
    %v269 = vmul.f32 %v266, %v268
    %v270 = vadd.f32 %v258, %v269
    %s271 = scalar_lea.vmem [#allocation5], 384
    %v272 = vld [vmem:[%s271] sm:$0xff]
    %v273 = vld [vmem:[%s271 + $0x8] sm:$0xff]
    %v274 = vld [vmem:[%s271 + $0x10] sm:$0xff]
    %v275 = vld [vmem:[%s271 + $0x18] sm:$0xff]
    %v276 = vld [vmem:[%s271 + $0x20] sm:$0xff]
    %v277 = vld [vmem:[%s271 + $0x28] sm:$0xff]
    %v278 = vld [vmem:[%s271 + $0x30] sm:$0xff]
    %v279 = vld [vmem:[%s271 + $0x38] sm:$0xff]
    %v280 = vld [vmem:[%s271 + $0x40] sm:$0xff]
    %v281 = vld [vmem:[%s271 + $0x48] sm:$0xff]
    %v282 = vld [vmem:[%s271 + $0x50] sm:$0xff]
    %v283 = vld [vmem:[%s271 + $0x58] sm:$0xff]
    %v284 = vld [vmem:[%s271 + $0x60] sm:$0xff]
    %v285 = vld [vmem:[%s271 + $0x68] sm:$0xff]
    %v286 = vld [vmem:[%s271 + $0x70] sm:$0xff]
    %v287 = vld [vmem:[%s271 + $0x78] sm:$0xff]
    %v288 = vld [vmem:[%s271 + $0x80] sm:$0xff]
    %v289 = vld [vmem:[%s271 + $0x88] sm:$0xff]
    %v290 = vld [vmem:[%s271 + $0x90] sm:$0xff]
    %v291 = vld [vmem:[%s271 + $0x98] sm:$0xff]
    %v292 = vld [vmem:[%s271 + $0xa0] sm:$0xff]
    %v293 = vld [vmem:[%s271 + $0xa8] sm:$0xff]
    %v294 = vld [vmem:[%s271 + $0xb0] sm:$0xff]
    %v295 = vld [vmem:[%s271 + $0xb8] sm:$0xff]
    %v296 = vld [vmem:[%s271 + $0xc0] sm:$0xff]
    %v297 = vld [vmem:[%s271 + $0xc8] sm:$0xff]
    %v298 = vld [vmem:[%s271 + $0xd0] sm:$0xff]
    %v299 = vld [vmem:[%s271 + $0xd8] sm:$0xff]
    %v300 = vld [vmem:[%s271 + $0xe0] sm:$0xff]
    %v301 = vld [vmem:[%s271 + $0xe8] sm:$0xff]
    %v302 = vld [vmem:[%s271 + $0xf0] sm:$0xff]
    %v303 = vld [vmem:[%s271 + $0xf8] sm:$0xff]
    %v304 = vld [vmem:[%s271 + $0x100] sm:$0xff]
    %v305 = vld [vmem:[%s271 + $0x108] sm:$0xff]
    %v306 = vld [vmem:[%s271 + $0x110] sm:$0xff]
    %v307 = vld [vmem:[%s271 + $0x118] sm:$0xff]
    %v308 = vld [vmem:[%s271 + $0x120] sm:$0xff]
    %v309 = vld [vmem:[%s271 + $0x128] sm:$0xff]
    %v310 = vld [vmem:[%s271 + $0x130] sm:$0xff]
    %v311 = vld [vmem:[%s271 + $0x138] sm:$0xff]
    %v312 = vld [vmem:[%s271 + $0x140] sm:$0xff]
    %v313 = vld [vmem:[%s271 + $0x148] sm:$0xff]
    %v314 = vld [vmem:[%s271 + $0x150] sm:$0xff]
    %v315 = vld [vmem:[%s271 + $0x158] sm:$0xff]
    %v316 = vld [vmem:[%s271 + $0x160] sm:$0xff]
    %v317 = vld [vmem:[%s271 + $0x168] sm:$0xff]
    %v318 = vld [vmem:[%s271 + $0x170] sm:$0xff]
    %v319 = vld [vmem:[%s271 + $0x178] sm:$0xff]
    %s320 = scalar_lea.vmem [#allocation7], 3
    %v321 = vld [vmem:[%s320] sm:$0x7]
    %v323 = vlaneseq
    %v324 = vshrl.u32 %v323, 7
    %v325 = vsub.s32 0, %v324
    %v326 = vrot.slane %v321, %v325
    %v327 = vlaneseq
    %v328 = vshrl.u32 %v327, 7
    %v329 = vsub.s32 1, %v328
    %v330 = vrot.slane %v321, %v329
    %v331 = vlaneseq
    %v332 = vshrl.u32 %v331, 7
    %v333 = vsub.s32 2, %v332
    %v334 = vrot.slane %v321, %v333
    %338 = vmatprep.subr.mxu0 %v273
    %339 = vmatpush1.msra.mxu0 %v272
    %340 = vmatprep.subr.mxu0 %v276
    %341 = vmatpush1.msra.mxu0 %v275
    %342 = vmatprep.subr.mxu0 %v279
    %343 = vmatpush1.msra.mxu0 %v278
    %344 = vmatprep.subr.mxu0 %v282
    %345 = vmatpush1.msra.mxu0 %v281
    %346 = vmatprep.subr.mxu0 %v285
    %347 = vmatpush1.msra.mxu0 %v284
    %348 = vmatprep.subr.mxu0 %v288
    %349 = vmatpush1.msra.mxu0 %v287
    %350 = vmatprep.subr.mxu0 %v291
    %351 = vmatpush1.msra.mxu0 %v290
    %352 = vmatprep.subr.mxu0 %v294
    %353 = vmatpush1.msra.mxu0 %v293
    %354 = vmatprep.subr.mxu0 %v297
    %355 = vmatpush1.msra.mxu0 %v296
    %356 = vmatprep.subr.mxu0 %v300
    %357 = vmatpush1.msra.mxu0 %v299
    %358 = vmatprep.subr.mxu0 %v303
    %359 = vmatpush1.msra.mxu0 %v302
    %360 = vmatprep.subr.mxu0 %v306
    %361 = vmatpush1.msra.mxu0 %v305
    %362 = vmatprep.subr.mxu0 %v309
    %363 = vmatpush1.msra.mxu0 %v308
    %364 = vmatprep.subr.mxu0 %v312
    %365 = vmatpush1.msra.mxu0 %v311
    %366 = vmatprep.subr.mxu0 %v315
    %367 = vmatpush1.msra.mxu0 %v314
    %368 = vmatprep.subr.mxu0 %v318
    %369 = vmatpush1.msra.mxu0 %v317
    %370 = vmatprep.subr.mxu0 0.0
    %371 = vmatpush1.msra.mxu0 0.0
    %372 = vmatprep.subr.mxu0 0.0
    %373 = vmatpush1.msra.mxu0 0.0
    %374 = vmatprep.subr.mxu0 0.0
    %375 = vmatpush1.msra.mxu0 0.0
    %376 = vmatprep.subr.mxu0 0.0
    %377 = vmatpush1.msra.mxu0 0.0
    %378 = vmatprep.subr.mxu0 0.0
    %379 = vmatpush1.msra.mxu0 0.0
    %380 = vmatprep.subr.mxu0 0.0
    %381 = vmatpush1.msra.mxu0 0.0
    %382 = vmatprep.subr.mxu0 0.0
    %383 = vmatpush1.msra.mxu0 0.0
    %384 = vmatprep.subr.mxu0 0.0
    %385 = vmatpush1.msra.mxu0 0.0
    %386 = vmatprep.subr.mxu0 0.0
    %387 = vmatpush1.msra.mxu0 0.0
    %388 = vmatprep.subr.mxu0 0.0
    %389 = vmatpush1.msra.mxu0 0.0
    %390 = vmatprep.subr.mxu0 0.0
    %391 = vmatpush1.msra.mxu0 0.0
    %392 = vmatprep.subr.mxu0 0.0
    %393 = vmatpush1.msra.mxu0 0.0
    %394 = vmatprep.subr.mxu0 0.0
    %395 = vmatpush1.msra.mxu0 0.0
    %396 = vmatprep.subr.mxu0 0.0
    %397 = vmatpush1.msra.mxu0 0.0
    %398 = vmatprep.subr.mxu0 0.0
    %399 = vmatpush1.msra.mxu0 0.0
    %400 = vmatprep.subr.mxu0 0.0
    %401 = vmatpush1.msra.mxu0 0.0
    %402 = vmatprep.mubr.f32.mxu0 0.0
    %403 = vmatmul.mubr.f32.gmra.mrb[0].mxu0 %v270
    %v404 = vpop.f32.mrb[0].mxu0
    %v405 = vadd.f32 %v326, %v404
    %v406 = vpop.f32.mrb[0].mxu0
    %v407 = vadd.f32 %v330, %v406
    %408 = vdwg.mxu0
    %409 = vmatprep.subr.mxu0 0.0
    %410 = vmatpush1.msra.mxu0 %v274
    %411 = vmatprep.subr.mxu0 0.0
    %412 = vmatpush1.msra.mxu0 %v277
    %413 = vmatprep.subr.mxu0 0.0
    %414 = vmatpush1.msra.mxu0 %v280
    %415 = vmatprep.subr.mxu0 0.0
    %416 = vmatpush1.msra.mxu0 %v283
    %417 = vmatprep.subr.mxu0 0.0
    %418 = vmatpush1.msra.mxu0 %v286
    %419 = vmatprep.subr.mxu0 0.0
    %420 = vmatpush1.msra.mxu0 %v289
    %421 = vmatprep.subr.mxu0 0.0
    %422 = vmatpush1.msra.mxu0 %v292
    %423 = vmatprep.subr.mxu0 0.0
    %424 = vmatpush1.msra.mxu0 %v295
    %425 = vmatprep.subr.mxu0 0.0
    %426 = vmatpush1.msra.mxu0 %v298
    %427 = vmatprep.subr.mxu0 0.0
    %428 = vmatpush1.msra.mxu0 %v301
    %429 = vmatprep.subr.mxu0 0.0
    %430 = vmatpush1.msra.mxu0 %v304
    %431 = vmatprep.subr.mxu0 0.0
    %432 = vmatpush1.msra.mxu0 %v307
    %433 = vmatprep.subr.mxu0 0.0
    %434 = vmatpush1.msra.mxu0 %v310
    %435 = vmatprep.subr.mxu0 0.0
    %436 = vmatpush1.msra.mxu0 %v313
    %437 = vmatprep.subr.mxu0 0.0
    %438 = vmatpush1.msra.mxu0 %v316
    %439 = vmatprep.subr.mxu0 0.0
    %440 = vmatpush1.msra.mxu0 %v319
    %441 = vmatprep.subr.mxu0 0.0
    %442 = vmatpush1.msra.mxu0 0.0
    %443 = vmatprep.subr.mxu0 0.0
    %444 = vmatpush1.msra.mxu0 0.0
    %445 = vmatprep.subr.mxu0 0.0
    %446 = vmatpush1.msra.mxu0 0.0
    %447 = vmatprep.subr.mxu0 0.0
    %448 = vmatpush1.msra.mxu0 0.0
    %449 = vmatprep.subr.mxu0 0.0
    %450 = vmatpush1.msra.mxu0 0.0
    %451 = vmatprep.subr.mxu0 0.0
    %452 = vmatpush1.msra.mxu0 0.0
    %453 = vmatprep.subr.mxu0 0.0
    %454 = vmatpush1.msra.mxu0 0.0
    %455 = vmatprep.subr.mxu0 0.0
    %456 = vmatpush1.msra.mxu0 0.0
    %457 = vmatprep.subr.mxu0 0.0
    %458 = vmatpush1.msra.mxu0 0.0
    %459 = vmatprep.subr.mxu0 0.0
    %460 = vmatpush1.msra.mxu0 0.0
    %461 = vmatprep.subr.mxu0 0.0
    %462 = vmatpush1.msra.mxu0 0.0
    %463 = vmatprep.subr.mxu0 0.0
    %464 = vmatpush1.msra.mxu0 0.0
    %465 = vmatprep.subr.mxu0 0.0
    %466 = vmatpush1.msra.mxu0 0.0
    %467 = vmatprep.subr.mxu0 0.0
    %468 = vmatpush1.msra.mxu0 0.0
    %469 = vmatprep.subr.mxu0 0.0
    %470 = vmatpush1.msra.mxu0 0.0
    %471 = vmatprep.subr.mxu0 0.0
    %472 = vmatpush1.msra.mxu0 0.0
    %473 = vmatprep.mubr.f32.mxu0 0.0
    %474 = vmatmul.mubr.f32.gmra.mrb[0].mxu0 %v270
    %v475 = vpop.f32.mrb[0].mxu0
    %v476 = vadd.f32 %v334, %v475
    %v477 = vpop.f32.mrb[0].mxu0
    %478 = vdwg.mxu0
    %v479 = vxor.u32 %v405, 2147483648
    %v480 = vmul.f32 %v479, 1.442695
    %v481 = vpow.pop %v480
    %v482 = vadd.f32 %v481, 1.0
    %v483 = vrcp.pop %v482
    %v484 = vmul.f32 1.0, %v483
    %v485 = vmax.f32 %v407, 0.0
    %v486 = vsub.f32 %v485, %v476
    %v487 = vmul.f32 %v484, %v486
    %v488 = vadd.f32 %v476, %v487
    %s489 = scalar_lea.vmem [#allocation5], 768
    %v490 = vld [vmem:[%s489] sm:$0xff]
    %v491 = vld [vmem:[%s489 + $0x8] sm:$0xff]
    %v492 = vld [vmem:[%s489 + $0x10] sm:$0xff]
    %v493 = vld [vmem:[%s489 + $0x18] sm:$0xff]
    %v494 = vld [vmem:[%s489 + $0x20] sm:$0xff]
    %v495 = vld [vmem:[%s489 + $0x28] sm:$0xff]
    %v496 = vld [vmem:[%s489 + $0x30] sm:$0xff]
    %v497 = vld [vmem:[%s489 + $0x38] sm:$0xff]
    %v498 = vld [vmem:[%s489 + $0x40] sm:$0xff]
    %v499 = vld [vmem:[%s489 + $0x48] sm:$0xff]
    %v500 = vld [vmem:[%s489 + $0x50] sm:$0xff]
    %v501 = vld [vmem:[%s489 + $0x58] sm:$0xff]
    %v502 = vld [vmem:[%s489 + $0x60] sm:$0xff]
    %v503 = vld [vmem:[%s489 + $0x68] sm:$0xff]
    %v504 = vld [vmem:[%s489 + $0x70] sm:$0xff]
    %v505 = vld [vmem:[%s489 + $0x78] sm:$0xff]
    %v506 = vld [vmem:[%s489 + $0x80] sm:$0xff]
    %v507 = vld [vmem:[%s489 + $0x88] sm:$0xff]
    %v508 = vld [vmem:[%s489 + $0x90] sm:$0xff]
    %v509 = vld [vmem:[%s489 + $0x98] sm:$0xff]
    %v510 = vld [vmem:[%s489 + $0xa0] sm:$0xff]
    %v511 = vld [vmem:[%s489 + $0xa8] sm:$0xff]
    %v512 = vld [vmem:[%s489 + $0xb0] sm:$0xff]
    %v513 = vld [vmem:[%s489 + $0xb8] sm:$0xff]
    %v514 = vld [vmem:[%s489 + $0xc0] sm:$0xff]
    %v515 = vld [vmem:[%s489 + $0xc8] sm:$0xff]
    %v516 = vld [vmem:[%s489 + $0xd0] sm:$0xff]
    %v517 = vld [vmem:[%s489 + $0xd8] sm:$0xff]
    %v518 = vld [vmem:[%s489 + $0xe0] sm:$0xff]
    %v519 = vld [vmem:[%s489 + $0xe8] sm:$0xff]
    %v520 = vld [vmem:[%s489 + $0xf0] sm:$0xff]
    %v521 = vld [vmem:[%s489 + $0xf8] sm:$0xff]
    %v522 = vld [vmem:[%s489 + $0x100] sm:$0xff]
    %v523 = vld [vmem:[%s489 + $0x108] sm:$0xff]
    %v524 = vld [vmem:[%s489 + $0x110] sm:$0xff]
    %v525 = vld [vmem:[%s489 + $0x118] sm:$0xff]
    %v526 = vld [vmem:[%s489 + $0x120] sm:$0xff]
    %v527 = vld [vmem:[%s489 + $0x128] sm:$0xff]
    %v528 = vld [vmem:[%s489 + $0x130] sm:$0xff]
    %v529 = vld [vmem:[%s489 + $0x138] sm:$0xff]
    %v530 = vld [vmem:[%s489 + $0x140] sm:$0xff]
    %v531 = vld [vmem:[%s489 + $0x148] sm:$0xff]
    %v532 = vld [vmem:[%s489 + $0x150] sm:$0xff]
    %v533 = vld [vmem:[%s489 + $0x158] sm:$0xff]
    %v534 = vld [vmem:[%s489 + $0x160] sm:$0xff]
    %v535 = vld [vmem:[%s489 + $0x168] sm:$0xff]
    %v536 = vld [vmem:[%s489 + $0x170] sm:$0xff]
    %v537 = vld [vmem:[%s489 + $0x178] sm:$0xff]
    %s538 = scalar_lea.vmem [#allocation7], 6
    %v539 = vld [vmem:[%s538] sm:$0x7]
    %v541 = vlaneseq
    %v542 = vshrl.u32 %v541, 7
    %v543 = vsub.s32 0, %v542
    %v544 = vrot.slane %v539, %v543
    %v545 = vlaneseq
    %v546 = vshrl.u32 %v545, 7
    %v547 = vsub.s32 1, %v546
    %v548 = vrot.slane %v539, %v547
    %v549 = vlaneseq
    %v550 = vshrl.u32 %v549, 7
    %v551 = vsub.s32 2, %v550
    %v552 = vrot.slane %v539, %v551
    %556 = vmatprep.subr.mxu0 %v491
    %557 = vmatpush1.msra.mxu0 %v490
    %558 = vmatprep.subr.mxu0 %v494
    %559 = vmatpush1.msra.mxu0 %v493
    %560 = vmatprep.subr.mxu0 %v497
    %561 = vmatpush1.msra.mxu0 %v496
    %562 = vmatprep.subr.mxu0 %v500
    %563 = vmatpush1.msra.mxu0 %v499
    %564 = vmatprep.subr.mxu0 %v503
    %565 = vmatpush1.msra.mxu0 %v502
    %566 = vmatprep.subr.mxu0 %v506
    %567 = vmatpush1.msra.mxu0 %v505
    %568 = vmatprep.subr.mxu0 %v509
    %569 = vmatpush1.msra.mxu0 %v508
    %570 = vmatprep.subr.mxu0 %v512
    %571 = vmatpush1.msra.mxu0 %v511
    %572 = vmatprep.subr.mxu0 %v515
    %573 = vmatpush1.msra.mxu0 %v514
    %574 = vmatprep.subr.mxu0 %v518
    %575 = vmatpush1.msra.mxu0 %v517
    %576 = vmatprep.subr.mxu0 %v521
    %577 = vmatpush1.msra.mxu0 %v520
    %578 = vmatprep.subr.mxu0 %v524
    %579 = vmatpush1.msra.mxu0 %v523
    %580 = vmatprep.subr.mxu0 %v527
    %581 = vmatpush1.msra.mxu0 %v526
    %582 = vmatprep.subr.mxu0 %v530
    %583 = vmatpush1.msra.mxu0 %v529
    %584 = vmatprep.subr.mxu0 %v533
    %585 = vmatpush1.msra.mxu0 %v532
    %586 = vmatprep.subr.mxu0 %v536
    %587 = vmatpush1.msra.mxu0 %v535
    %588 = vmatprep.subr.mxu0 0.0
    %589 = vmatpush1.msra.mxu0 0.0
    %590 = vmatprep.subr.mxu0 0.0
    %591 = vmatpush1.msra.mxu0 0.0
    %592 = vmatprep.subr.mxu0 0.0
    %593 = vmatpush1.msra.mxu0 0.0
    %594 = vmatprep.subr.mxu0 0.0
    %595 = vmatpush1.msra.mxu0 0.0
    %596 = vmatprep.subr.mxu0 0.0
    %597 = vmatpush1.msra.mxu0 0.0
    %598 = vmatprep.subr.mxu0 0.0
    %599 = vmatpush1.msra.mxu0 0.0
    %600 = vmatprep.subr.mxu0 0.0
    %601 = vmatpush1.msra.mxu0 0.0
    %602 = vmatprep.subr.mxu0 0.0
    %603 = vmatpush1.msra.mxu0 0.0
    %604 = vmatprep.subr.mxu0 0.0
    %605 = vmatpush1.msra.mxu0 0.0
    %606 = vmatprep.subr.mxu0 0.0
    %607 = vmatpush1.msra.mxu0 0.0
    %608 = vmatprep.subr.mxu0 0.0
    %609 = vmatpush1.msra.mxu0 0.0
    %610 = vmatprep.subr.mxu0 0.0
    %611 = vmatpush1.msra.mxu0 0.0
    %612 = vmatprep.subr.mxu0 0.0
    %613 = vmatpush1.msra.mxu0 0.0
    %614 = vmatprep.subr.mxu0 0.0
    %615 = vmatpush1.msra.mxu0 0.0
    %616 = vmatprep.subr.mxu0 0.0
    %617 = vmatpush1.msra.mxu0 0.0
    %618 = vmatprep.subr.mxu0 0.0
    %619 = vmatpush1.msra.mxu0 0.0
    %620 = vmatprep.mubr.f32.mxu0 0.0
    %621 = vmatmul.mubr.f32.gmra.mrb[0].mxu0 %v488
    %v622 = vpop.f32.mrb[0].mxu0
    %v623 = vadd.f32 %v544, %v622
    %v624 = vpop.f32.mrb[0].mxu0
    %v625 = vadd.f32 %v548, %v624
    %626 = vdwg.mxu0
    %627 = vmatprep.subr.mxu0 0.0
    %628 = vmatpush1.msra.mxu0 %v492
    %629 = vmatprep.subr.mxu0 0.0
    %630 = vmatpush1.msra.mxu0 %v495
    %631 = vmatprep.subr.mxu0 0.0
    %632 = vmatpush1.msra.mxu0 %v498
    %633 = vmatprep.subr.mxu0 0.0
    %634 = vmatpush1.msra.mxu0 %v501
    %635 = vmatprep.subr.mxu0 0.0
    %636 = vmatpush1.msra.mxu0 %v504
    %637 = vmatprep.subr.mxu0 0.0
    %638 = vmatpush1.msra.mxu0 %v507
    %639 = vmatprep.subr.mxu0 0.0
    %640 = vmatpush1.msra.mxu0 %v510
    %641 = vmatprep.subr.mxu0 0.0
    %642 = vmatpush1.msra.mxu0 %v513
    %643 = vmatprep.subr.mxu0 0.0
    %644 = vmatpush1.msra.mxu0 %v516
    %645 = vmatprep.subr.mxu0 0.0
    %646 = vmatpush1.msra.mxu0 %v519
    %647 = vmatprep.subr.mxu0 0.0
    %648 = vmatpush1.msra.mxu0 %v522
    %649 = vmatprep.subr.mxu0 0.0
    %650 = vmatpush1.msra.mxu0 %v525
    %651 = vmatprep.subr.mxu0 0.0
    %652 = vmatpush1.msra.mxu0 %v528
    %653 = vmatprep.subr.mxu0 0.0
    %654 = vmatpush1.msra.mxu0 %v531
    %655 = vmatprep.subr.mxu0 0.0
    %656 = vmatpush1.msra.mxu0 %v534
    %657 = vmatprep.subr.mxu0 0.0
    %658 = vmatpush1.msra.mxu0 %v537
    %659 = vmatprep.subr.mxu0 0.0
    %660 = vmatpush1.msra.mxu0 0.0
    %661 = vmatprep.subr.mxu0 0.0
    %662 = vmatpush1.msra.mxu0 0.0
    %663 = vmatprep.subr.mxu0 0.0
    %664 = vmatpush1.msra.mxu0 0.0
    %665 = vmatprep.subr.mxu0 0.0
    %666 = vmatpush1.msra.mxu0 0.0
    %667 = vmatprep.subr.mxu0 0.0
    %668 = vmatpush1.msra.mxu0 0.0
    %669 = vmatprep.subr.mxu0 0.0
    %670 = vmatpush1.msra.mxu0 0.0
    %671 = vmatprep.subr.mxu0 0.0
    %672 = vmatpush1.msra.mxu0 0.0
    %673 = vmatprep.subr.mxu0 0.0
    %674 = vmatpush1.msra.mxu0 0.0
    %675 = vmatprep.subr.mxu0 0.0
    %676 = vmatpush1.msra.mxu0 0.0
    %677 = vmatprep.subr.mxu0 0.0
    %678 = vmatpush1.msra.mxu0 0.0
    %679 = vmatprep.subr.mxu0 0.0
    %680 = vmatpush1.msra.mxu0 0.0
    %681 = vmatprep.subr.mxu0 0.0
    %682 = vmatpush1.msra.mxu0 0.0
    %683 = vmatprep.subr.mxu0 0.0
    %684 = vmatpush1.msra.mxu0 0.0
    %685 = vmatprep.subr.mxu0 0.0
    %686 = vmatpush1.msra.mxu0 0.0
    %687 = vmatprep.subr.mxu0 0.0
    %688 = vmatpush1.msra.mxu0 0.0
    %689 = vmatprep.subr.mxu0 0.0
    %690 = vmatpush1.msra.mxu0 0.0
    %691 = vmatprep.mubr.f32.mxu0 0.0
    %692 = vmatmul.mubr.f32.gmra.mrb[0].mxu0 %v488
    %v693 = vpop.f32.mrb[0].mxu0
    %v694 = vadd.f32 %v552, %v693
    %v695 = vpop.f32.mrb[0].mxu0
    %696 = vdwg.mxu0
    %v697 = vxor.u32 %v623, 2147483648
    %v698 = vmul.f32 %v697, 1.442695
    %v699 = vpow.pop %v698
    %v700 = vadd.f32 %v699, 1.0
    %v701 = vrcp.pop %v700
    %v702 = vmul.f32 1.0, %v701
    %v703 = vmax.f32 %v625, 0.0
    %v704 = vsub.f32 %v703, %v694
    %v705 = vmul.f32 %v702, %v704
    %v706 = vadd.f32 %v694, %v705
    %707 = vst [vmem:[#allocation8] sm:$0xff] %v706
    // Predicated region
    $region26: #{tpu_custom_call.1} parent=1 // pred_check
      _
    $region27: #{tpu_custom_call.1} parent=1 // pred_check_branch
      %709 = sbr.rel (0) target = $region29
    $region28: #{tpu_custom_call.1} parent=1 // pred_region
      %s711 = ssub.s32 128, 128
      %712 = vsyncadd [#allocation4], %s711
      %s714 = sshll.u32 [#allocation8], 4
      %s715 = int_to_ptr.vmem [resolvable:$true] %s714
      %717 = dma.vmem_to_hbm [thread:$0]  %s715, 128, %s3, [#allocation4]
    $region29: #{tpu_custom_call.1} parent=1 // pred_fallthru
      _
    // Predicated region
    $region30: #{tpu_custom_call.1} parent=1 // pred_check
      _
    $region31: #{tpu_custom_call.1} parent=1 // pred_check_branch
      %719 = sbr.rel (0) target = $region33
    $region32: #{tpu_custom_call.1} parent=1 // pred_region
      %720 = dma.done [#allocation4], 128
    $region33: #{tpu_custom_call.1} parent=1 // pred_fallthru
      _
    %721 = vsyncpa [#allocation3], 1
    %722 = vsyncpa [#allocation6], 1
    %723 = vsyncpa [#allocation4], 1

</llo_original>
